<compile_context>
chip_gen: v7x
topology: tpu7x:2x2x1
jax: 0.10.0
libtpu: 0.0.40
codegen_flags: <defaults>
</compile_context>

<pallas_src>
import jax
import jax.numpy as jnp
from jax import lax
from jax.experimental import pallas as pl
from jax.experimental.pallas import tpu as pltpu

LEAK = 0.01        # torch.nn.LeakyReLU default negative_slope
H1, H2 = 128, 32   # hidden widths fixed by the module
LANES = 128        # TPU lane width; all packed weight segments padded to this
SEG_ROWS = 16      # row alignment of packed segments (valid for f32 and bf16 tiles)


def _leaky(x):
    return jnp.where(x > 0, x, LEAK * x)


def _round_up(n, m):
    return ((n + m - 1) // m) * m


def _cdiv(a, b):
    return (a + b - 1) // b


def pack_params(params, dtype=jnp.float32):
    """One-time weight prep: fold / lane-shift / stack and pack into a single
    lane-padded buffer (one weight DMA; all in-kernel slices are static).

    NOTE: the lane/zero-padding scheme is sound only because LeakyReLU(0) == 0,
    so padded lanes stay *exactly* zero through every stage. Any future bias or
    activation writing nonzero values into padded lanes would silently break the
    shifted-Wc2 / stacked-W3 trick.
    """
    wa1, wa2, wa3, wc1, bc1, wc2, wc3 = params
    audio_dim = wa1.shape[0]
    clinical_dim = wc1.shape[0]
    out_dim = wa3.shape[1]
    assert out_dim <= LANES
    assert wc1.shape[1] == H1 and wc2.shape == (H1, H2)

    # (1) Fold the two bias-free audio Linears (no nonlinearity between them).
    w_a12 = jnp.dot(wa1, wa2, precision=lax.Precision.HIGHEST)      # (audio_dim, 32)

    # (2) Shift Wc2's 32 output columns to lanes 32:64 so the clinical hidden
    #     occupies a lane range disjoint from the audio hidden (lanes 0:32).
    wc2_sh = jnp.zeros((H1, LANES), jnp.float32).at[:, H2:2 * H2].set(wc2)

    # (3) Stacked output projection: one (128, O) block hit by (h + g);
    #     Wa3 in rows 0:32, Wc3 in rows 32:64, everything else zero. Kept full
    #     128 lanes wide so the kernel never slices the weight operand.
    w3 = jnp.zeros((H1, LANES), jnp.float32)
    w3 = w3.at[0:H2, 0:out_dim].set(wa3)
    w3 = w3.at[H2:2 * H2, 0:out_dim].set(wc3)

    # (4) Pack all pieces into one (rows, 128) buffer -> a single weight DMA.
    pieces = [w_a12, wc1, jnp.reshape(bc1, (1, -1)), wc2_sh, w3]
    offsets, blocks, off = [], [], 0
    for p in pieces:
        assert p.shape[1] <= LANES
        rows = _round_up(p.shape[0], SEG_ROWS)
        blocks.append(jnp.pad(p.astype(jnp.float32),
                              ((0, rows - p.shape[0]), (0, LANES - p.shape[1]))))
        offsets.append(off)
        off += rows
    packed = jnp.concatenate(blocks, axis=0).astype(dtype)
    meta = dict(offsets=tuple(offsets),
                audio_dim=audio_dim, clinical_dim=clinical_dim, output_dim=out_dim)
    return packed, meta


def _make_kernel(meta):
    o_a12, o_c1, o_b1, o_c2, o_3 = meta["offsets"]
    A = meta["audio_dim"]
    C = meta["clinical_dim"]
    O = meta["output_dim"]

    def kernel(a_ref, c_ref, w_ref, o_ref):
        cdt = w_ref.dtype                      # MXU operand dtype (f32 or bf16)
        a = a_ref[...]                         # (bm, audio_dim)
        c = c_ref[...]                         # (bm, clinical_dim)

        # Static, segment-aligned slices of the packed weight buffer.
        w_a12 = w_ref[o_a12:o_a12 + A, :]      # (A, 128); cols >= 32 are zero
        wc1   = w_ref[o_c1:o_c1 + C, :]        # (C, 128)
        bc1   = w_ref[o_b1:o_b1 + 1, :]        # (1, 128)
        wc2   = w_ref[o_c2:o_c2 + H1, :]       # (128, 128); real cols 32:64
        w3    = w_ref[o_3:o_3 + H1, :]         # (128, 128); real rows 0:64, cols 0:O

        # Audio branch: folded Linear pair, then LeakyReLU (real lanes 0:32).
        h = _leaky(jnp.dot(a, w_a12, preferred_element_type=jnp.float32))

        # Clinical branch: Linear(+bias) -> LeakyReLU -> shifted Linear -> LeakyReLU
        # (real lanes 32:64 after the shifted Wc2; padded lanes stay exactly 0).
        g = _leaky(jnp.dot(c, wc1, preferred_element_type=jnp.float32)
                   + bc1.astype(jnp.float32))
        g = _leaky(jnp.dot(g.astype(cdt), wc2, preferred_element_type=jnp.float32))

        # Fused output projection: disjoint lane ranges -> plain add (no concat);
        # one K=128 matmul yields out_a + out_c. Slice to O lanes only at store.
        hg = (h + g).astype(cdt)
        res = jnp.dot(hg, w3, preferred_element_type=jnp.float32)      # (bm, 128)
        o_ref[...] = res[:, :O]

    return kernel


def _pick_block_m(batch, sublane, max_block=4096):
    # HBM-load-bound kernel: big batch tiles amortize the ~0.35us per-grid-step
    # overhead. Keep >=2 grid steps when the batch allows it so v7x's two
    # TensorCores both get work through the "parallel" batch axis.
    if batch <= 2 * sublane:
        return batch
    n_steps = max(2, _cdiv(batch, max_block))
    return _round_up(_cdiv(batch, n_steps), sublane)


def late_fusion_nn(a, c, packed, meta, *, block_m=None):
    batch = a.shape[0]
    a_dim, c_dim = a.shape[1], c.shape[1]
    out_dim = meta["output_dim"]
    in_dtype = packed.dtype
    itemsize = jnp.dtype(in_dtype).itemsize
    sublane = 16 if itemsize == 2 else 8

    if block_m is None:
        block_m = _pick_block_m(batch, sublane)
    grid_m = _cdiv(batch, block_m)
    padded = grid_m * block_m

    a_in = a.astype(in_dtype)
    c_in = c.astype(in_dtype)
    if padded != batch:                     # ragged batch: zero-pad, slice back after
        a_in = jnp.pad(a_in, ((0, padded - batch), (0, 0)))
        c_in = jnp.pad(c_in, ((0, padded - batch), (0, 0)))

    # Scoped-VMEM limit: double-buffered activations + weights + intermediates
    # with 2x headroom (v5e's 16 MiB scoped default would cap large tiles);
    # capped at 48 MiB to stay inside v7x's 64 MiB physical VMEM.
    vmem_need = (2 * block_m * (a_dim + c_dim) * itemsize
                 + 2 * block_m * out_dim * 4
                 + 2 * packed.size * itemsize
                 + 6 * block_m * LANES * 4)
    vmem_limit = int(min(max(2 * vmem_need, 16 * 2**20), 48 * 2**20))

    cost = pl.CostEstimate(
        flops=2 * batch * (a_dim * H2 + c_dim * H1 + H1 * H2 + 2 * H2 * out_dim),
        transcendentals=0,
        bytes_accessed=batch * (a_dim + c_dim) * itemsize
                       + batch * out_dim * 4 + packed.size * itemsize)

    kernel = _make_kernel(meta)
    out = pl.pallas_call(
        kernel,
        out_shape=jax.ShapeDtypeStruct((padded, out_dim), jnp.float32),
        grid_spec=pltpu.PrefetchScalarGridSpec(
            num_scalar_prefetch=0,
            grid=(grid_m,),
            in_specs=[
                pl.BlockSpec((block_m, a_dim), lambda i: (i, 0)),   # stream activations
                pl.BlockSpec((block_m, c_dim), lambda i: (i, 0)),
                pl.BlockSpec(packed.shape, lambda i: (0, 0)),       # weights VMEM-resident
            ],
            out_specs=pl.BlockSpec((block_m, out_dim), lambda i: (i, 0)),
        ),
        compiler_params=pltpu.CompilerParams(
            dimension_semantics=("parallel",),
            vmem_limit_bytes=vmem_limit),
        cost_estimate=cost,
    )(a_in, c_in, packed)
    return out[:batch] if padded != batch else out


def reference(a, c, params):
    """Pure-JAX reference mirroring the PyTorch module exactly (no fusions)."""
    wa1, wa2, wa3, wc1, bc1, wc2, wc3 = params
    h = (a @ wa1) @ wa2
    h = jnp.where(h > 0, h, LEAK * h)
    out_a = h @ wa3
    g = c @ wc1 + bc1
    g = jnp.where(g > 0, g, LEAK * g)
    g = g @ wc2
    g = jnp.where(g > 0, g, LEAK * g)
    out_c = g @ wc3
    return out_a + out_c


if __name__ == "__main__":
    # Small shapes consistent with the module's forward:
    #   a: (batch, audio_dim), c: (batch, clinical_dim)
    batch, audio_dim, clinical_dim, output_dim = 8, 64, 32, 8

    key = jax.random.PRNGKey(0)
    keys = jax.random.split(key, 9)

    a = jax.random.normal(keys[0], (batch, audio_dim), jnp.float32)
    c = jax.random.normal(keys[1], (batch, clinical_dim), jnp.float32)

    # Deterministic parameter init (PyTorch nn.Linear weights pre-transposed to (in, out)).
    def w(k, fan_in, fan_out):
        return jax.random.normal(k, (fan_in, fan_out), jnp.float32) * (1.0 / jnp.sqrt(fan_in))

    wa1 = w(keys[2], audio_dim, H1)         # AudioNN fc[0]
    wa2 = w(keys[3], H1, H2)                # AudioNN fc[1]
    wa3 = w(keys[4], H2, output_dim)        # AudioNN fc[3]
    wc1 = w(keys[5], clinical_dim, H1)      # ClinicalNN fc[0] weight
    bc1 = jax.random.normal(keys[6], (1, H1), jnp.float32) * 0.1  # ClinicalNN fc[0] bias
    wc2 = w(keys[7], H1, H2)                # ClinicalNN fc[2]
    wc3 = w(keys[8], H2, output_dim)        # ClinicalNN fc[4]

    params = (wa1, wa2, wa3, wc1, bc1, wc2, wc3)

    packed, meta = pack_params(params)      # one-time weight fold/shift/stack/pack (f32)
    out = late_fusion_nn(a, c, packed, meta)
    out = jax.block_until_ready(out)

    ref = reference(a, c, params)
    assert out.shape == (batch, output_dim)
    assert jnp.allclose(out, ref, atol=1e-4, rtol=1e-4), "mismatch vs reference"

    print("KERNEL_OK")
</pallas_src>

<mosaic_0001>
module attributes {stable_mosaic.version = 11 : i64} {
  func.func @kernel(%arg0: i32, %arg1: memref<8x64xf32, #tpu.memory_space<vmem>>, %arg2: memref<8x32xf32, #tpu.memory_space<vmem>>, %arg3: memref<368x128xf32, #tpu.memory_space<vmem>>, %arg4: memref<8x8xf32, #tpu.memory_space<vmem>>) attributes {dimension_semantics = [#tpu.dimension_semantics<parallel>], iteration_bounds = array<i64: 1>, scalar_prefetch = 0 : i64, scratch_operands = 0 : i64, tpu.core_type = #tpu.core_type<tc>, window_params = [{transform_indices = @transform_0, window_bounds = array<i64: 8, 64>}, {transform_indices = @transform_1, window_bounds = array<i64: 8, 32>}, {pipeline_mode = #tpu.pipeline_mode<synchronous>, transform_indices = @transform_2, window_bounds = array<i64: 368, 128>}, {transform_indices = @transform_3, window_bounds = array<i64: 8, 8>}]} {
    %c0 = arith.constant 0 : index
    %c0_0 = arith.constant 0 : index
    %0 = vector.load %arg1[%c0, %c0_0] : memref<8x64xf32, #tpu.memory_space<vmem>>, vector<8x64xf32>
    %c0_1 = arith.constant 0 : index
    %c0_2 = arith.constant 0 : index
    %1 = vector.load %arg2[%c0_1, %c0_2] : memref<8x32xf32, #tpu.memory_space<vmem>>, vector<8x32xf32>
    %c0_3 = arith.constant 0 : index
    %c0_4 = arith.constant 0 : index
    %2 = vector.load %arg3[%c0_3, %c0_4] : memref<368x128xf32, #tpu.memory_space<vmem>>, vector<64x128xf32>
    %c64 = arith.constant 64 : index
    %c0_5 = arith.constant 0 : index
    %3 = vector.load %arg3[%c64, %c0_5] : memref<368x128xf32, #tpu.memory_space<vmem>>, vector<32x128xf32>
    %c96 = arith.constant 96 : index
    %c0_6 = arith.constant 0 : index
    %4 = vector.load %arg3[%c96, %c0_6] : memref<368x128xf32, #tpu.memory_space<vmem>>, vector<1x128xf32>
    %c112 = arith.constant 112 : index
    %c0_7 = arith.constant 0 : index
    %5 = vector.load %arg3[%c112, %c0_7] : memref<368x128xf32, #tpu.memory_space<vmem>>, vector<128x128xf32>
    %c240 = arith.constant 240 : index
    %c0_8 = arith.constant 0 : index
    %6 = vector.load %arg3[%c240, %c0_8] : memref<368x128xf32, #tpu.memory_space<vmem>>, vector<128x128xf32>
    %cst = arith.constant dense<0.000000e+00> : vector<8x128xf32>
    %7 = tpu.matmul %0, %2, %cst {dimension_numbers = #tpu.dot_dimension_numbers<[1], [0], [0], [1], [0, 0, 1, 1], [], []>} : vector<8x64xf32>, vector<64x128xf32>, vector<8x128xf32> -> vector<8x128xf32>
    %cst_9 = arith.constant 0.000000e+00 : f32
    %8 = vector.broadcast %cst_9 : f32 to vector<8x128xf32>
    %9 = arith.cmpf ogt, %7, %8 : vector<8x128xf32>
    %cst_10 = arith.constant 0.00999999977 : f32
    %10 = vector.broadcast %cst_10 : f32 to vector<8x128xf32>
    %11 = arith.mulf %10, %7 : vector<8x128xf32>
    %12 = arith.select %9, %7, %11 : vector<8x128xi1>, vector<8x128xf32>
    %cst_11 = arith.constant dense<0.000000e+00> : vector<8x128xf32>
    %13 = tpu.matmul %1, %3, %cst_11 {dimension_numbers = #tpu.dot_dimension_numbers<[1], [0], [0], [1], [0, 0, 1, 1], [], []>} : vector<8x32xf32>, vector<32x128xf32>, vector<8x128xf32> -> vector<8x128xf32>
    %14 = vector.broadcast %4 : vector<1x128xf32> to vector<8x128xf32>
    %15 = arith.addf %13, %14 : vector<8x128xf32>
    %cst_12 = arith.constant 0.000000e+00 : f32
    %16 = vector.broadcast %cst_12 : f32 to vector<8x128xf32>
    %17 = arith.cmpf ogt, %15, %16 : vector<8x128xf32>
    %cst_13 = arith.constant 0.00999999977 : f32
    %18 = vector.broadcast %cst_13 : f32 to vector<8x128xf32>
    %19 = arith.mulf %18, %15 : vector<8x128xf32>
    %20 = arith.select %17, %15, %19 : vector<8x128xi1>, vector<8x128xf32>
    %cst_14 = arith.constant dense<0.000000e+00> : vector<8x128xf32>
    %21 = tpu.matmul %20, %5, %cst_14 {dimension_numbers = #tpu.dot_dimension_numbers<[1], [0], [0], [1], [0, 0, 1, 1], [], []>} : vector<8x128xf32>, vector<128x128xf32>, vector<8x128xf32> -> vector<8x128xf32>
    %cst_15 = arith.constant 0.000000e+00 : f32
    %22 = vector.broadcast %cst_15 : f32 to vector<8x128xf32>
    %23 = arith.cmpf ogt, %21, %22 : vector<8x128xf32>
    %cst_16 = arith.constant 0.00999999977 : f32
    %24 = vector.broadcast %cst_16 : f32 to vector<8x128xf32>
    %25 = arith.mulf %24, %21 : vector<8x128xf32>
    %26 = arith.select %23, %21, %25 : vector<8x128xi1>, vector<8x128xf32>
    %27 = arith.addf %12, %26 : vector<8x128xf32>
    %cst_17 = arith.constant dense<0.000000e+00> : vector<8x128xf32>
    %28 = tpu.matmul %27, %6, %cst_17 {dimension_numbers = #tpu.dot_dimension_numbers<[1], [0], [0], [1], [0, 0, 1, 1], [], []>} : vector<8x128xf32>, vector<128x128xf32>, vector<8x128xf32> -> vector<8x128xf32>
    %29 = vector.extract_strided_slice %28 {offsets = [0, 0], sizes = [8, 8], strides = [1, 1]} : vector<8x128xf32> to vector<8x8xf32>
    %c0_18 = arith.constant 0 : index
    %c0_19 = arith.constant 0 : index
    %30 = vector.load %arg4[%c0_18, %c0_19] : memref<8x8xf32, #tpu.memory_space<vmem>>, vector<8x8xf32>
    tpu.vector_store %arg4[%c0_18, %c0_19], %29 {strides = array<i32>} : memref<8x8xf32, #tpu.memory_space<vmem>>, vector<8x8xf32>,
    return
  }
  func.func @transform_0(%arg0: i32) -> (i32, i32) {
    %c0_i32 = arith.constant 0 : i32
    %c0_i32_0 = arith.constant 0 : i32
    return %arg0, %c0_i32 : i32, i32
  }
  func.func @transform_1(%arg0: i32) -> (i32, i32) {
    %c0_i32 = arith.constant 0 : i32
    %c0_i32_0 = arith.constant 0 : i32
    return %arg0, %c0_i32 : i32, i32
  }
  func.func @transform_2(%arg0: i32) -> (i32, i32) {
    %c0_i32 = arith.constant 0 : i32
    %c0_i32_0 = arith.constant 0 : i32
    %c0_i32_1 = arith.constant 0 : i32
    return %c0_i32, %c0_i32_0 : i32, i32
  }
  func.func @transform_3(%arg0: i32) -> (i32, i32) {
    %c0_i32 = arith.constant 0 : i32
    %c0_i32_0 = arith.constant 0 : i32
    return %arg0, %c0_i32 : i32, i32
  }
}

</mosaic_0001>

<llo_original>
// kernel: tpu_custom_call.1
$region0: #{tpu_custom_call.1}
  #allocation0 [shape = 'u32[]', space=smem, size = 0x4, offset = 0x4, fixed_abs, tag = 'smem constant byte address 0x4 - core index']
  #allocation1 [shape = 'u32[144,128]{1,0:T(1,128)}', space=vmem, size = 0x12000, scoped, tag = 'internal scratch']
  %s0 = inlined_call_operand.hbm [shape: f32[8,64], index: 0, kind: input, shape index: {}]
  %s1 = inlined_call_operand.hbm [shape: f32[8,32], index: 1, kind: input, shape index: {}]
  %s2 = inlined_call_operand.hbm [shape: f32[368,128], index: 2, kind: input, shape index: {}]
  %s3 = inlined_call_operand.hbm [shape: f32[8,8], index: 3, kind: output, shape index: {}]
  %s4 = sld [smem:[#allocation0]]
  $region34: #{tpu_custom_call.1} parent=0
    _
  %s6 = ssub.s32 1, %s4
  %s7 = scalar_select 0, %s6, %s4
  $region1: #{tpu_custom_call.1} parent=0
    #allocation2 [shape = 'u8[4096]{0}', space=vmem, size = 0x1000, scoped, tag = 'input window, operand 0, single buffered']
    #allocation3 [shape = 's32[1]{0}', space=sflag, size = 0x4, scoped, tag = 'scoped memory for tpu_custom_call.1']
    #allocation4 [shape = 's32[1]{0}', space=sflag, size = 0x4, scoped, tag = 'scoped memory for tpu_custom_call.1']
    #allocation5 [shape = 'u8[4096]{0}', space=vmem, size = 0x1000, scoped, tag = 'input window, operand 1, single buffered']
    #allocation6 [shape = 's32[1]{0}', space=sflag, size = 0x4, scoped, tag = 'scoped memory for tpu_custom_call.1']
    #allocation7 [shape = 'u8[188416]{0}', space=vmem, size = 0x2e000, scoped, tag = 'input window, operand 2, single buffered']
    #allocation8 [shape = 'u8[4096]{0}', space=vmem, size = 0x1000, scoped, tag = 'output window, operand 0, single buffered']
    %8 = vsyncpa [#allocation3], 0
    %9 = vsyncpa [#allocation6], 0
    %10 = vsyncpa [#allocation4], 0
    // Predicated region
    $region2: #{tpu_custom_call.1} parent=1 // pred_check
      _
    $region3: #{tpu_custom_call.1} parent=1 // pred_check_branch
      %12 = sbr.rel (0) target = $region5
    $region4: #{tpu_custom_call.1} parent=1 // pred_region
      %s14 = ssub.s32 128, 128
      %15 = vsyncadd [#allocation3], %s14
      %s17 = sshll.u32 [#allocation2], 4
      %s18 = int_to_ptr.vmem [resolvable:$true] %s17
      %20 = dma.hbm_to_vmem [thread:$0]  %s0, 128, %s18, [#allocation3]
    $region5: #{tpu_custom_call.1} parent=1 // pred_fallthru
      _
    // Predicated region
    $region6: #{tpu_custom_call.1} parent=1 // pred_check
      _
    $region7: #{tpu_custom_call.1} parent=1 // pred_check_branch
      %22 = sbr.rel (0) target = $region9
    $region8: #{tpu_custom_call.1} parent=1 // pred_region
      %s24 = ssub.s32 128, 128
      %25 = vsyncadd [#allocation6], %s24
      %s27 = sshll.u32 [#allocation5], 4
      %s28 = int_to_ptr.vmem [resolvable:$true] %s27
      %30 = dma.hbm_to_vmem [thread:$0]  %s1, 128, %s28, [#allocation6]
    $region9: #{tpu_custom_call.1} parent=1 // pred_fallthru
      _
    // Predicated region
    $region10: #{tpu_custom_call.1} parent=1 // pred_check
      _
    $region11: #{tpu_custom_call.1} parent=1 // pred_check_branch
      %32 = sbr.rel (0) target = $region13
    $region12: #{tpu_custom_call.1} parent=1 // pred_region
      %s34 = ssub.s32 5888, 5888
      %35 = vsyncadd [#allocation6], %s34
      %s36 = sshll.u32 [#allocation7], 4
      %s37 = int_to_ptr.vmem [resolvable:$true] %s36
      %42 = dma.hbm_to_vmem [thread:$0]  %s2, 5888, %s37, [#allocation6], 128, 128, 8
    $region13: #{tpu_custom_call.1} parent=1 // pred_fallthru
      _
    // Predicated region
    $region14: #{tpu_custom_call.1} parent=1 // pred_check
      _
    $region15: #{tpu_custom_call.1} parent=1 // pred_check_branch
      %44 = sbr.rel (0) target = $region17
    $region16: #{tpu_custom_call.1} parent=1 // pred_region
      %45 = dma.done [#allocation3], 128
    $region17: #{tpu_custom_call.1} parent=1 // pred_fallthru
      _
    // Predicated region
    $region18: #{tpu_custom_call.1} parent=1 // pred_check
      _
    $region19: #{tpu_custom_call.1} parent=1 // pred_check_branch
      %47 = sbr.rel (0) target = $region21
    $region20: #{tpu_custom_call.1} parent=1 // pred_region
      %48 = dma.done [#allocation6], 128
    $region21: #{tpu_custom_call.1} parent=1 // pred_fallthru
      _
    // Predicated region
    $region22: #{tpu_custom_call.1} parent=1 // pred_check
      _
    $region23: #{tpu_custom_call.1} parent=1 // pred_check_branch
      %50 = sbr.rel (0) target = $region25
    $region24: #{tpu_custom_call.1} parent=1 // pred_region
      %51 = dma.done [#allocation6], 5888
    $region25: #{tpu_custom_call.1} parent=1 // pred_fallthru
      _
    %v52 = vld [vmem:[#allocation2] sm:$0xff]
    %v53 = vld [vmem:[#allocation5] sm:$0xff]
    %v54 = vld [vmem:[#allocation7] sm:$0xff]
    %v55 = vld [vmem:[#allocation7 + $0x8] sm:$0xff]
    %v56 = vld [vmem:[#allocation7 + $0x10] sm:$0xff]
    %v57 = vld [vmem:[#allocation7 + $0x18] sm:$0xff]
    %v58 = vld [vmem:[#allocation7 + $0x20] sm:$0xff]
    %v59 = vld [vmem:[#allocation7 + $0x28] sm:$0xff]
    %v60 = vld [vmem:[#allocation7 + $0x30] sm:$0xff]
    %v61 = vld [vmem:[#allocation7 + $0x38] sm:$0xff]
    %v62 = vld [vmem:[#allocation7 + $0x40] sm:$0xff]
    %v63 = vld [vmem:[#allocation7 + $0x48] sm:$0xff]
    %v64 = vld [vmem:[#allocation7 + $0x50] sm:$0xff]
    %v65 = vld [vmem:[#allocation7 + $0x58] sm:$0xff]
    %v66 = vld [vmem:[#allocation7 + $0x60] sm:$0x1]
    %v67 = vld [vmem:[#allocation7 + $0x70] sm:$0xff]
    %v68 = vld [vmem:[#allocation7 + $0x78] sm:$0xff]
    %v69 = vld [vmem:[#allocation7 + $0x80] sm:$0xff]
    %v70 = vld [vmem:[#allocation7 + $0x88] sm:$0xff]
    %v71 = vld [vmem:[#allocation7 + $0x90] sm:$0xff]
    %v72 = vld [vmem:[#allocation7 + $0x98] sm:$0xff]
    %v73 = vld [vmem:[#allocation7 + $0xa0] sm:$0xff]
    %v74 = vld [vmem:[#allocation7 + $0xa8] sm:$0xff]
    %v75 = vld [vmem:[#allocation7 + $0xb0] sm:$0xff]
    %v76 = vld [vmem:[#allocation7 + $0xb8] sm:$0xff]
    %v77 = vld [vmem:[#allocation7 + $0xc0] sm:$0xff]
    %v78 = vld [vmem:[#allocation7 + $0xc8] sm:$0xff]
    %v79 = vld [vmem:[#allocation7 + $0xd0] sm:$0xff]
    %v80 = vld [vmem:[#allocation7 + $0xd8] sm:$0xff]
    %v81 = vld [vmem:[#allocation7 + $0xe0] sm:$0xff]
    %v82 = vld [vmem:[#allocation7 + $0xe8] sm:$0xff]
    %v83 = vld [vmem:[#allocation7 + $0xf0] sm:$0xff]
    %v84 = vld [vmem:[#allocation7 + $0xf8] sm:$0xff]
    %v85 = vld [vmem:[#allocation7 + $0x100] sm:$0xff]
    %v86 = vld [vmem:[#allocation7 + $0x108] sm:$0xff]
    %v87 = vld [vmem:[#allocation7 + $0x110] sm:$0xff]
    %v88 = vld [vmem:[#allocation7 + $0x118] sm:$0xff]
    %v89 = vld [vmem:[#allocation7 + $0x120] sm:$0xff]
    %v90 = vld [vmem:[#allocation7 + $0x128] sm:$0xff]
    %v91 = vld [vmem:[#allocation7 + $0x130] sm:$0xff]
    %v92 = vld [vmem:[#allocation7 + $0x138] sm:$0xff]
    %v93 = vld [vmem:[#allocation7 + $0x140] sm:$0xff]
    %v94 = vld [vmem:[#allocation7 + $0x148] sm:$0xff]
    %v95 = vld [vmem:[#allocation7 + $0x150] sm:$0xff]
    %v96 = vld [vmem:[#allocation7 + $0x158] sm:$0xff]
    %v97 = vld [vmem:[#allocation7 + $0x160] sm:$0xff]
    %v98 = vld [vmem:[#allocation7 + $0x168] sm:$0xff]
    %vm99 = vcmask 523264
    %v101 = vsel %vm99, %v52, 0
    %103 = vmatprep.subr.mxu0 0.0
    %104 = vmatpush1.msra.mxu0 %v54
    %105 = vmatprep.subr.mxu0 0.0
    %106 = vmatpush1.msra.mxu0 %v55
    %107 = vmatprep.subr.mxu0 0.0
    %108 = vmatpush1.msra.mxu0 %v56
    %109 = vmatprep.subr.mxu0 0.0
    %110 = vmatpush1.msra.mxu0 %v57
    %111 = vmatprep.subr.mxu0 0.0
    %112 = vmatpush1.msra.mxu0 %v58
    %113 = vmatprep.subr.mxu0 0.0
    %114 = vmatpush1.msra.mxu0 %v59
    %115 = vmatprep.subr.mxu0 0.0
    %116 = vmatpush1.msra.mxu0 %v60
    %117 = vmatprep.subr.mxu0 0.0
    %118 = vmatpush1.msra.mxu0 %v61
    %119 = vmatprep.subr.mxu0 0.0
    %120 = vmatpush1.msra.mxu0 0.0
    %121 = vmatprep.subr.mxu0 0.0
    %122 = vmatpush1.msra.mxu0 0.0
    %123 = vmatprep.subr.mxu0 0.0
    %124 = vmatpush1.msra.mxu0 0.0
    %125 = vmatprep.subr.mxu0 0.0
    %126 = vmatpush1.msra.mxu0 0.0
    %127 = vmatprep.subr.mxu0 0.0
    %128 = vmatpush1.msra.mxu0 0.0
    %129 = vmatprep.subr.mxu0 0.0
    %130 = vmatpush1.msra.mxu0 0.0
    %131 = vmatprep.subr.mxu0 0.0
    %132 = vmatpush1.msra.mxu0 0.0
    %133 = vmatprep.subr.mxu0 0.0
    %134 = vmatpush1.msra.mxu0 0.0
    %135 = vmatprep.subr.mxu0 0.0
    %136 = vmatpush1.msra.mxu0 0.0
    %137 = vmatprep.subr.mxu0 0.0
    %138 = vmatpush1.msra.mxu0 0.0
    %139 = vmatprep.subr.mxu0 0.0
    %140 = vmatpush1.msra.mxu0 0.0
    %141 = vmatprep.subr.mxu0 0.0
    %142 = vmatpush1.msra.mxu0 0.0
    %143 = vmatprep.subr.mxu0 0.0
    %144 = vmatpush1.msra.mxu0 0.0
    %145 = vmatprep.subr.mxu0 0.0
    %146 = vmatpush1.msra.mxu0 0.0
    %147 = vmatprep.subr.mxu0 0.0
    %148 = vmatpush1.msra.mxu0 0.0
    %149 = vmatprep.subr.mxu0 0.0
    %150 = vmatpush1.msra.mxu0 0.0
    %151 = vmatprep.subr.mxu0 0.0
    %152 = vmatpush1.msra.mxu0 0.0
    %153 = vmatprep.subr.mxu0 0.0
    %154 = vmatpush1.msra.mxu0 0.0
    %155 = vmatprep.subr.mxu0 0.0
    %156 = vmatpush1.msra.mxu0 0.0
    %157 = vmatprep.subr.mxu0 0.0
    %158 = vmatpush1.msra.mxu0 0.0
    %159 = vmatprep.subr.mxu0 0.0
    %160 = vmatpush1.msra.mxu0 0.0
    %161 = vmatprep.subr.mxu0 0.0
    %162 = vmatpush1.msra.mxu0 0.0
    %163 = vmatprep.subr.mxu0 0.0
    %164 = vmatpush1.msra.mxu0 0.0
    %165 = vmatprep.subr.mxu0 0.0
    %166 = vmatpush1.msra.mxu0 0.0
    %167 = vmatprep.mubr.f32.mxu0 0.0
    %168 = vmatmul.mubr.f32.gmra.mrb[0].mxu0 %v101
    %v169 = vpop.f32.mrb[0].mxu0
    %v170 = vadd.f32 0.0, %v169
    %v171 = vpop.f32.mrb[0].mxu0
    %172 = vdwg.mxu0
    %vm173 = vcmp.gt.f32.partialorder %v170, 0.0
    %v174 = vmul.f32 %v170, 0.01
    %v175 = vsel %vm173, %v170, %v174
    %v176 = vlaneseq
    %v177 = vshrl.u32 %v176, 7
    %v178 = vsub.s32 0, %v177
    %v179 = vrot.slane %v66, %v178
    %vm180 = vcmask 261120
    %v182 = vsel %vm180, %v53, 0
    %184 = vmatprep.subr.mxu0 0.0
    %185 = vmatpush1.msra.mxu0 %v62
    %186 = vmatprep.subr.mxu0 0.0
    %187 = vmatpush1.msra.mxu0 %v63
    %188 = vmatprep.subr.mxu0 0.0
    %189 = vmatpush1.msra.mxu0 %v64
    %190 = vmatprep.subr.mxu0 0.0
    %191 = vmatpush1.msra.mxu0 %v65
    %192 = vmatprep.subr.mxu0 0.0
    %193 = vmatpush1.msra.mxu0 0.0
    %194 = vmatprep.subr.mxu0 0.0
    %195 = vmatpush1.msra.mxu0 0.0
    %196 = vmatprep.subr.mxu0 0.0
    %197 = vmatpush1.msra.mxu0 0.0
    %198 = vmatprep.subr.mxu0 0.0
    %199 = vmatpush1.msra.mxu0 0.0
    %200 = vmatprep.subr.mxu0 0.0
    %201 = vmatpush1.msra.mxu0 0.0
    %202 = vmatprep.subr.mxu0 0.0
    %203 = vmatpush1.msra.mxu0 0.0
    %204 = vmatprep.subr.mxu0 0.0
    %205 = vmatpush1.msra.mxu0 0.0
    %206 = vmatprep.subr.mxu0 0.0
    %207 = vmatpush1.msra.mxu0 0.0
    %208 = vmatprep.subr.mxu0 0.0
    %209 = vmatpush1.msra.mxu0 0.0
    %210 = vmatprep.subr.mxu0 0.0
    %211 = vmatpush1.msra.mxu0 0.0
    %212 = vmatprep.subr.mxu0 0.0
    %213 = vmatpush1.msra.mxu0 0.0
    %214 = vmatprep.subr.mxu0 0.0
    %215 = vmatpush1.msra.mxu0 0.0
    %216 = vmatprep.subr.mxu0 0.0
    %217 = vmatpush1.msra.mxu0 0.0
    %218 = vmatprep.subr.mxu0 0.0
    %219 = vmatpush1.msra.mxu0 0.0
    %220 = vmatprep.subr.mxu0 0.0
    %221 = vmatpush1.msra.mxu0 0.0
    %222 = vmatprep.subr.mxu0 0.0
    %223 = vmatpush1.msra.mxu0 0.0
    %224 = vmatprep.subr.mxu0 0.0
    %225 = vmatpush1.msra.mxu0 0.0
    %226 = vmatprep.subr.mxu0 0.0
    %227 = vmatpush1.msra.mxu0 0.0
    %228 = vmatprep.subr.mxu0 0.0
    %229 = vmatpush1.msra.mxu0 0.0
    %230 = vmatprep.subr.mxu0 0.0
    %231 = vmatpush1.msra.mxu0 0.0
    %232 = vmatprep.subr.mxu0 0.0
    %233 = vmatpush1.msra.mxu0 0.0
    %234 = vmatprep.subr.mxu0 0.0
    %235 = vmatpush1.msra.mxu0 0.0
    %236 = vmatprep.subr.mxu0 0.0
    %237 = vmatpush1.msra.mxu0 0.0
    %238 = vmatprep.subr.mxu0 0.0
    %239 = vmatpush1.msra.mxu0 0.0
    %240 = vmatprep.subr.mxu0 0.0
    %241 = vmatpush1.msra.mxu0 0.0
    %242 = vmatprep.subr.mxu0 0.0
    %243 = vmatpush1.msra.mxu0 0.0
    %244 = vmatprep.subr.mxu0 0.0
    %245 = vmatpush1.msra.mxu0 0.0
    %246 = vmatprep.subr.mxu0 0.0
    %247 = vmatpush1.msra.mxu0 0.0
    %248 = vmatprep.mubr.f32.mxu0 0.0
    %249 = vmatmul.mubr.f32.gmra.mrb[0].mxu0 %v182
    %v250 = vpop.f32.mrb[0].mxu0
    %v251 = vadd.f32 %v179, %v250
    %v252 = vpop.f32.mrb[0].mxu0
    %253 = vdwg.mxu0
    %vm254 = vcmp.gt.f32.partialorder %v251, 0.0
    %v255 = vmul.f32 %v251, 0.01
    %v256 = vsel %vm254, %v251, %v255
    %257 = vmatprep.subr.mxu0 0.0
    %258 = vmatpush1.msra.mxu0 %v67
    %259 = vmatprep.subr.mxu0 0.0
    %260 = vmatpush1.msra.mxu0 %v68
    %261 = vmatprep.subr.mxu0 0.0
    %262 = vmatpush1.msra.mxu0 %v69
    %263 = vmatprep.subr.mxu0 0.0
    %264 = vmatpush1.msra.mxu0 %v70
    %265 = vmatprep.subr.mxu0 0.0
    %266 = vmatpush1.msra.mxu0 %v71
    %267 = vmatprep.subr.mxu0 0.0
    %268 = vmatpush1.msra.mxu0 %v72
    %269 = vmatprep.subr.mxu0 0.0
    %270 = vmatpush1.msra.mxu0 %v73
    %271 = vmatprep.subr.mxu0 0.0
    %272 = vmatpush1.msra.mxu0 %v74
    %273 = vmatprep.subr.mxu0 0.0
    %274 = vmatpush1.msra.mxu0 %v75
    %275 = vmatprep.subr.mxu0 0.0
    %276 = vmatpush1.msra.mxu0 %v76
    %277 = vmatprep.subr.mxu0 0.0
    %278 = vmatpush1.msra.mxu0 %v77
    %279 = vmatprep.subr.mxu0 0.0
    %280 = vmatpush1.msra.mxu0 %v78
    %281 = vmatprep.subr.mxu0 0.0
    %282 = vmatpush1.msra.mxu0 %v79
    %283 = vmatprep.subr.mxu0 0.0
    %284 = vmatpush1.msra.mxu0 %v80
    %285 = vmatprep.subr.mxu0 0.0
    %286 = vmatpush1.msra.mxu0 %v81
    %287 = vmatprep.subr.mxu0 0.0
    %288 = vmatpush1.msra.mxu0 %v82
    %289 = vmatprep.subr.mxu0 0.0
    %290 = vmatpush1.msra.mxu0 0.0
    %291 = vmatprep.subr.mxu0 0.0
    %292 = vmatpush1.msra.mxu0 0.0
    %293 = vmatprep.subr.mxu0 0.0
    %294 = vmatpush1.msra.mxu0 0.0
    %295 = vmatprep.subr.mxu0 0.0
    %296 = vmatpush1.msra.mxu0 0.0
    %297 = vmatprep.subr.mxu0 0.0
    %298 = vmatpush1.msra.mxu0 0.0
    %299 = vmatprep.subr.mxu0 0.0
    %300 = vmatpush1.msra.mxu0 0.0
    %301 = vmatprep.subr.mxu0 0.0
    %302 = vmatpush1.msra.mxu0 0.0
    %303 = vmatprep.subr.mxu0 0.0
    %304 = vmatpush1.msra.mxu0 0.0
    %305 = vmatprep.subr.mxu0 0.0
    %306 = vmatpush1.msra.mxu0 0.0
    %307 = vmatprep.subr.mxu0 0.0
    %308 = vmatpush1.msra.mxu0 0.0
    %309 = vmatprep.subr.mxu0 0.0
    %310 = vmatpush1.msra.mxu0 0.0
    %311 = vmatprep.subr.mxu0 0.0
    %312 = vmatpush1.msra.mxu0 0.0
    %313 = vmatprep.subr.mxu0 0.0
    %314 = vmatpush1.msra.mxu0 0.0
    %315 = vmatprep.subr.mxu0 0.0
    %316 = vmatpush1.msra.mxu0 0.0
    %317 = vmatprep.subr.mxu0 0.0
    %318 = vmatpush1.msra.mxu0 0.0
    %319 = vmatprep.subr.mxu0 0.0
    %320 = vmatpush1.msra.mxu0 0.0
    %321 = vmatprep.mubr.f32.mxu0 0.0
    %322 = vmatmul.mubr.f32.gmra.mrb[0].mxu0 %v256
    %v323 = vpop.f32.mrb[0].mxu0
    %v324 = vadd.f32 0.0, %v323
    %v325 = vpop.f32.mrb[0].mxu0
    %326 = vdwg.mxu0
    %vm327 = vcmp.gt.f32.partialorder %v324, 0.0
    %v328 = vmul.f32 %v324, 0.01
    %v329 = vsel %vm327, %v324, %v328
    %v330 = vadd.f32 %v175, %v329
    %331 = vmatprep.subr.mxu0 0.0
    %332 = vmatpush1.msra.mxu0 %v83
    %333 = vmatprep.subr.mxu0 0.0
    %334 = vmatpush1.msra.mxu0 %v84
    %335 = vmatprep.subr.mxu0 0.0
    %336 = vmatpush1.msra.mxu0 %v85
    %337 = vmatprep.subr.mxu0 0.0
    %338 = vmatpush1.msra.mxu0 %v86
    %339 = vmatprep.subr.mxu0 0.0
    %340 = vmatpush1.msra.mxu0 %v87
    %341 = vmatprep.subr.mxu0 0.0
    %342 = vmatpush1.msra.mxu0 %v88
    %343 = vmatprep.subr.mxu0 0.0
    %344 = vmatpush1.msra.mxu0 %v89
    %345 = vmatprep.subr.mxu0 0.0
    %346 = vmatpush1.msra.mxu0 %v90
    %347 = vmatprep.subr.mxu0 0.0
    %348 = vmatpush1.msra.mxu0 %v91
    %349 = vmatprep.subr.mxu0 0.0
    %350 = vmatpush1.msra.mxu0 %v92
    %351 = vmatprep.subr.mxu0 0.0
    %352 = vmatpush1.msra.mxu0 %v93
    %353 = vmatprep.subr.mxu0 0.0
    %354 = vmatpush1.msra.mxu0 %v94
    %355 = vmatprep.subr.mxu0 0.0
    %356 = vmatpush1.msra.mxu0 %v95
    %357 = vmatprep.subr.mxu0 0.0
    %358 = vmatpush1.msra.mxu0 %v96
    %359 = vmatprep.subr.mxu0 0.0
    %360 = vmatpush1.msra.mxu0 %v97
    %361 = vmatprep.subr.mxu0 0.0
    %362 = vmatpush1.msra.mxu0 %v98
    %363 = vmatprep.subr.mxu0 0.0
    %364 = vmatpush1.msra.mxu0 0.0
    %365 = vmatprep.subr.mxu0 0.0
    %366 = vmatpush1.msra.mxu0 0.0
    %367 = vmatprep.subr.mxu0 0.0
    %368 = vmatpush1.msra.mxu0 0.0
    %369 = vmatprep.subr.mxu0 0.0
    %370 = vmatpush1.msra.mxu0 0.0
    %371 = vmatprep.subr.mxu0 0.0
    %372 = vmatpush1.msra.mxu0 0.0
    %373 = vmatprep.subr.mxu0 0.0
    %374 = vmatpush1.msra.mxu0 0.0
    %375 = vmatprep.subr.mxu0 0.0
    %376 = vmatpush1.msra.mxu0 0.0
    %377 = vmatprep.subr.mxu0 0.0
    %378 = vmatpush1.msra.mxu0 0.0
    %379 = vmatprep.subr.mxu0 0.0
    %380 = vmatpush1.msra.mxu0 0.0
    %381 = vmatprep.subr.mxu0 0.0
    %382 = vmatpush1.msra.mxu0 0.0
    %383 = vmatprep.subr.mxu0 0.0
    %384 = vmatpush1.msra.mxu0 0.0
    %385 = vmatprep.subr.mxu0 0.0
    %386 = vmatpush1.msra.mxu0 0.0
    %387 = vmatprep.subr.mxu0 0.0
    %388 = vmatpush1.msra.mxu0 0.0
    %389 = vmatprep.subr.mxu0 0.0
    %390 = vmatpush1.msra.mxu0 0.0
    %391 = vmatprep.subr.mxu0 0.0
    %392 = vmatpush1.msra.mxu0 0.0
    %393 = vmatprep.subr.mxu0 0.0
    %394 = vmatpush1.msra.mxu0 0.0
    %395 = vmatprep.mubr.f32.mxu0 0.0
    %396 = vmatmul.mubr.f32.gmra.mrb[0].mxu0 %v330
    %v397 = vpop.f32.mrb[0].mxu0
    %v398 = vadd.f32 0.0, %v397
    %v399 = vpop.f32.mrb[0].mxu0
    %400 = vdwg.mxu0
    %vm401 = vcmask 64512
    %402 = vst.msk [vmem:[#allocation8] sm:$0xff] %vm401, %v398
    // Predicated region
    $region26: #{tpu_custom_call.1} parent=1 // pred_check
      _
    $region27: #{tpu_custom_call.1} parent=1 // pred_check_branch
      %404 = sbr.rel (0) target = $region29
    $region28: #{tpu_custom_call.1} parent=1 // pred_region
      %s406 = ssub.s32 128, 128
      %407 = vsyncadd [#allocation4], %s406
      %s409 = sshll.u32 [#allocation8], 4
      %s410 = int_to_ptr.vmem [resolvable:$true] %s409
      %412 = dma.vmem_to_hbm [thread:$0]  %s410, 128, %s3, [#allocation4]
    $region29: #{tpu_custom_call.1} parent=1 // pred_fallthru
      _
    // Predicated region
    $region30: #{tpu_custom_call.1} parent=1 // pred_check
      _
    $region31: #{tpu_custom_call.1} parent=1 // pred_check_branch
      %414 = sbr.rel (0) target = $region33
    $region32: #{tpu_custom_call.1} parent=1 // pred_region
      %415 = dma.done [#allocation4], 128
    $region33: #{tpu_custom_call.1} parent=1 // pred_fallthru
      _
    %416 = vsyncpa [#allocation3], 1
    %417 = vsyncpa [#allocation6], 1
    %418 = vsyncpa [#allocation4], 1

</llo_original>
